<compile_context>
chip_gen: v5e
topology: v5e:2x2
jax: 0.10.0
libtpu: 0.0.40
codegen_flags: <defaults>
</compile_context>

<pallas_src>
import math
import functools

import jax
import jax.numpy as jnp
from jax import lax
from jax.experimental import pallas as pl
from jax.experimental.pallas import tpu as pltpu


def make_pe(max_len, d_model, dtype=jnp.float32):
    """Sinusoidal positional table, shape (1, max_len, d_model) (matches the module)."""
    position = jnp.arange(max_len, dtype=jnp.float32)[:, None]
    div_term = jnp.exp(
        jnp.arange(0, d_model, 2, dtype=jnp.float32) * (-(math.log(10000.0) / d_model))
    )
    ang = position * div_term
    pe = jnp.zeros((max_len, d_model), jnp.float32)
    pe = pe.at[:, 0::2].set(jnp.sin(ang))
    pe = pe.at[:, 1::2].set(jnp.cos(ang))
    return pe[None].astype(dtype)


def _mix_seed_host(seed):
    """Host-side 32-bit mix of the user seed (keeps the in-kernel path to one xor)."""
    x = int(seed) & 0xFFFFFFFF
    x ^= x >> 16
    x = (x * 0x7FEB352D) & 0xFFFFFFFF
    x ^= x >> 15
    x = (x * 0x846CA68B) & 0xFFFFFFFF
    x ^= x >> 16
    return x & 0x7FFFFFFF  # keep non-negative so int32<->uint32 casts are exact


def _pick_row_tile(n_rows, row_bytes, sub, max_block_bytes):
    """Largest row tile (multiple of `sub` dividing n_rows, or full extent) in budget."""
    max_rows = max(sub, max_block_bytes // max(row_bytes, 1))
    if n_rows <= max_rows:
        return n_rows
    t = (max_rows // sub) * sub
    best = max(t, sub)
    while t >= sub:
        if n_rows % t == 0:
            return t
        t -= sub
    return best  # no clean divisor: ragged last tile (Pallas masks the OOB region)


def _pos_enc_kernel(seed_ref, x_ref, pe_ref, o_ref, *,
                    p, training, pe_full, use_hw_prng, folded):
    r = pl.program_id(0)
    tr = x_ref.shape[1]

    if pe_full:
        # pe is resident (full-extent block, constant index map): slice our row tile.
        r0 = pl.multiple_of(r * tr, tr)
        pe_blk = pe_ref[:, pl.ds(r0, tr), :]
    else:
        pe_blk = pe_ref[...]

    # Do the add (and all dropout math) in f32, cast once at the store.
    y = x_ref[...].astype(jnp.float32) + pe_blk.astype(jnp.float32)

    if training and p > 0.0:
        shape = y.shape  # (Bblk, tr, 128)
        if folded:
            block_id = r
        else:
            block_id = r * pl.num_programs(1) + pl.program_id(1)

        if use_hw_prng:
            # Hardware PRNG: cheapest on real TPU (distinct stream per grid step).
            pltpu.prng_seed(seed_ref[0], block_id)
            raw = pltpu.prng_random_bits(shape)
            bits = raw if raw.dtype == jnp.uint32 else pltpu.bitcast(raw, jnp.uint32)
        else:
            # Counter-based hash (integer VPU ops only): runs everywhere.
            lanes = lax.broadcasted_iota(jnp.int32, shape, 2)
            rows = lax.broadcasted_iota(jnp.int32, shape, 1)
            local = rows * shape[2] + lanes
            if shape[0] > 1:
                local = local + lax.broadcasted_iota(jnp.int32, shape, 0) * (shape[1] * shape[2])
            block_elems = shape[0] * shape[1] * shape[2]
            idx = block_id * block_elems + local                  # unique global id
            z = idx.astype(jnp.uint32) ^ seed_ref[0].astype(jnp.uint32)
            z = z ^ (z >> 16)
            z = z * jnp.uint32(0x7FEB352D)
            z = z ^ (z >> 15)
            bits = z * jnp.uint32(0x846CA68B)                     # 2-round mixer

        threshold = jnp.uint32(min(int(round(p * 2.0 ** 32)), 2 ** 32 - 1))
        keep = bits >= threshold                                  # P(keep) = 1 - p
        scale = jnp.float32(1.0 / (1.0 - p))
        y = jnp.where(keep, y * scale, jnp.float32(0.0))

    o_ref[...] = y.astype(o_ref.dtype)


def positional_encoding(x, pe, *, p=0.05, training=False, seed=0, use_hw_prng=False):
    """x: (B, L, D); pe: (1, max_len, D). Returns dropout(x + pe[:, :L])."""
    B, L, D = x.shape
    pe_l = lax.slice_in_dim(pe, 0, L, axis=1).astype(x.dtype)     # (1, L, D)

    # Lane-dense view: flatten (L, D) and pad to a multiple of 128 columns so every
    # block's last dim is 128 (no masked partial stores).
    M = L * D
    n_cols = 128
    m_pad = pl.cdiv(M, n_cols) * n_cols
    xf = x.reshape(B, M)
    pef = pe_l.reshape(1, M)
    if m_pad != M:
        xf = jnp.pad(xf, ((0, 0), (0, m_pad - M)))
        pef = jnp.pad(pef, ((0, 0), (0, m_pad - M)))
    n_rows = m_pad // n_cols
    x3 = xf.reshape(B, n_rows, n_cols)
    pe3 = pef.reshape(1, n_rows, n_cols)

    itemsize = jnp.dtype(x.dtype).itemsize
    sub = {4: 8, 2: 16, 1: 32}.get(itemsize, 8)   # packed sublane granularity
    max_block_bytes = 4 * 1024 * 1024             # ~4 MiB blocks (amortize step cost)

    # Fold batch into the block whenever even the minimal folded block fits.
    fold_batch = B * sub * n_cols * itemsize <= max_block_bytes
    row_bytes = n_cols * itemsize * (B if fold_batch else 1)
    tr = _pick_row_tile(n_rows, row_bytes, sub, max_block_bytes)

    # Keep pe VMEM-resident (single constant block) when it is small and tiles evenly.
    pe_full = (n_rows * n_cols * itemsize <= 2 * 1024 * 1024) and (n_rows % tr == 0)

    if fold_batch:
        grid = (pl.cdiv(n_rows, tr),)
        x_spec = pl.BlockSpec((B, tr, n_cols), lambda r, s: (0, r, 0))
        out_spec = pl.BlockSpec((B, tr, n_cols), lambda r, s: (0, r, 0))
        pe_spec = (pl.BlockSpec((1, n_rows, n_cols), lambda r, s: (0, 0, 0))
                   if pe_full else
                   pl.BlockSpec((1, tr, n_cols), lambda r, s: (0, r, 0)))
        dims = ("parallel",)
    else:
        grid = (pl.cdiv(n_rows, tr), B)
        x_spec = pl.BlockSpec((1, tr, n_cols), lambda r, b, s: (b, r, 0))
        out_spec = pl.BlockSpec((1, tr, n_cols), lambda r, b, s: (b, r, 0))
        pe_spec = (pl.BlockSpec((1, n_rows, n_cols), lambda r, b, s: (0, 0, 0))
                   if pe_full else
                   pl.BlockSpec((1, tr, n_cols), lambda r, b, s: (0, r, 0)))
        dims = ("parallel", "parallel")

    seed_arr = jnp.array([_mix_seed_host(seed)], dtype=jnp.int32)
    kernel = functools.partial(
        _pos_enc_kernel,
        p=float(p), training=bool(training),
        pe_full=pe_full, use_hw_prng=bool(use_hw_prng), folded=fold_batch,
    )

    out = pl.pallas_call(
        kernel,
        out_shape=jax.ShapeDtypeStruct((B, n_rows, n_cols), x.dtype),
        grid_spec=pltpu.PrefetchScalarGridSpec(
            num_scalar_prefetch=1,
            grid=grid,
            in_specs=[x_spec, pe_spec],
            out_specs=out_spec,
        ),
        compiler_params=pltpu.CompilerParams(
            dimension_semantics=dims,
            vmem_limit_bytes=48 * 1024 * 1024,
        ),
    )(seed_arr, x3, pe3)

    return out.reshape(B, m_pad)[:, :M].reshape(B, L, D)


if __name__ == "__main__":
    # Small shapes consistent with the module: batch=2, seq=8, d_model=32, max_len=16.
    B, L, D, MAX_LEN = 2, 8, 32, 16
    P_DROP = 0.05

    key = jax.random.PRNGKey(0)
    x = jax.random.normal(key, (B, L, D), dtype=jnp.float32)
    pe = make_pe(MAX_LEN, D)
    ref = x + pe[:, :L, :]

    # Eval mode: dropout is identity -> must equal x + pe[:, :L].
    out_eval = positional_encoding(x, pe, p=P_DROP, training=False)
    jax.block_until_ready(out_eval)
    assert out_eval.shape == (B, L, D)
    assert jnp.allclose(out_eval, ref, atol=1e-6), "eval-mode mismatch vs reference"

    # Training mode: in-kernel inverted dropout. Every element must be either
    # dropped (0) or kept and scaled by 1/(1-p).
    out_train = positional_encoding(x, pe, p=P_DROP, training=True, seed=1234)
    jax.block_until_ready(out_train)
    assert out_train.shape == (B, L, D)
    scale = 1.0 / (1.0 - P_DROP)
    dropped = jnp.isclose(out_train, 0.0, atol=1e-6)
    kept = jnp.isclose(out_train, ref * scale, rtol=1e-5, atol=1e-6)
    assert bool(jnp.all(dropped | kept)), "training-mode dropout values inconsistent"

    # Padding path: L*D not a multiple of 128 (exercises the padded lane-dense fold).
    D2 = 24
    x2 = jax.random.normal(jax.random.PRNGKey(1), (B, L, D2), dtype=jnp.float32)
    pe2 = make_pe(MAX_LEN, D2)
    out2 = positional_encoding(x2, pe2, p=P_DROP, training=False)
    jax.block_until_ready(out2)
    assert out2.shape == (B, L, D2)
    assert jnp.allclose(out2, x2 + pe2[:, :L, :], atol=1e-6), "padded-path mismatch"

    print("KERNEL_OK")
</pallas_src>

<mosaic_0001>
module attributes {stable_mosaic.version = 11 : i64} {
  func.func @_pos_enc_kernel(%arg0: i32, %arg1: memref<1xi32, #tpu.memory_space<smem>>, %arg2: memref<2x2x128xf32, #tpu.memory_space<vmem>>, %arg3: memref<1x2x128xf32, #tpu.memory_space<vmem>>, %arg4: memref<2x2x128xf32, #tpu.memory_space<vmem>>) attributes {dimension_semantics = [#tpu.dimension_semantics<parallel>], iteration_bounds = array<i64: 1>, scalar_prefetch = 1 : i64, scratch_operands = 0 : i64, tpu.core_type = #tpu.core_type<tc>, window_params = [{transform_indices = @transform_0, window_bounds = array<i64: 2, 2, 128>}, {pipeline_mode = #tpu.pipeline_mode<synchronous>, transform_indices = @transform_1, window_bounds = array<i64: 1, 2, 128>}, {transform_indices = @transform_2, window_bounds = array<i64: 2, 2, 128>}]} {
    %c2_i32 = arith.constant 2 : i32
    %0 = arith.muli %arg0, %c2_i32 : i32
    %1 = tpu.assume_multiple %0, 2 : i32
    %c0 = arith.constant 0 : index
    %2 = arith.index_cast %1 : i32 to index
    %c0_0 = arith.constant 0 : index
    %3 = vector.load %arg3[%c0, %2, %c0_0] : memref<1x2x128xf32, #tpu.memory_space<vmem>>, vector<1x2x128xf32>
    %c0_1 = arith.constant 0 : index
    %c0_2 = arith.constant 0 : index
    %c0_3 = arith.constant 0 : index
    %4 = vector.load %arg2[%c0_1, %c0_2, %c0_3] : memref<2x2x128xf32, #tpu.memory_space<vmem>>, vector<2x2x128xf32>
    %5 = vector.broadcast %3 : vector<1x2x128xf32> to vector<2x2x128xf32>
    %6 = arith.addf %4, %5 : vector<2x2x128xf32>
    %c0_4 = arith.constant 0 : index
    %c0_5 = arith.constant 0 : index
    %c0_6 = arith.constant 0 : index
    %7 = vector.load %arg4[%c0_4, %c0_5, %c0_6] : memref<2x2x128xf32, #tpu.memory_space<vmem>>, vector<2x2x128xf32>
    tpu.vector_store %arg4[%c0_4, %c0_5, %c0_6], %6 {strides = array<i32>} : memref<2x2x128xf32, #tpu.memory_space<vmem>>, vector<2x2x128xf32>,
    return
  }
  func.func @transform_0(%arg0: i32, %arg1: memref<1xi32, #tpu.memory_space<smem>>) -> (i32, i32, i32) {
    %c0_i32 = arith.constant 0 : i32
    %c0_i32_0 = arith.constant 0 : i32
    %c0_i32_1 = arith.constant 0 : i32
    return %c0_i32, %arg0, %c0_i32_0 : i32, i32, i32
  }
  func.func @transform_1(%arg0: i32, %arg1: memref<1xi32, #tpu.memory_space<smem>>) -> (i32, i32, i32) {
    %c0_i32 = arith.constant 0 : i32
    %c0_i32_0 = arith.constant 0 : i32
    %c0_i32_1 = arith.constant 0 : i32
    %c0_i32_2 = arith.constant 0 : i32
    return %c0_i32, %c0_i32_0, %c0_i32_1 : i32, i32, i32
  }
  func.func @transform_2(%arg0: i32, %arg1: memref<1xi32, #tpu.memory_space<smem>>) -> (i32, i32, i32) {
    %c0_i32 = arith.constant 0 : i32
    %c0_i32_0 = arith.constant 0 : i32
    %c0_i32_1 = arith.constant 0 : i32
    return %c0_i32, %arg0, %c0_i32_0 : i32, i32, i32
  }
}

</mosaic_0001>

<llo_original>
// kernel: tpu_custom_call.1
$region0: #{tpu_custom_call.1}
  #allocation0 [shape = 'u32[]', space=smem, size = 0x4, offset = 0x4, fixed_abs, tag = 'smem constant byte address 0x4 - core index']
  #allocation1 [shape = 'u32[72,128]{1,0:T(1,128)}', space=vmem, size = 0x9000, scoped, tag = 'internal scratch']
  #allocation2 [shape = 's32[1]{0}', space=sflag, size = 0x4, scoped, tag = 'scoped memory for tpu_custom_call.1']
  #allocation3 [shape = 's32[1]{0:T(128)S(6)}', space=smem, size = 0x200, scoped, tag = 'prefetched SMEM operand 0']
  %s0 = inlined_call_operand.<no memory space> [shape: s32[1], index: 0, kind: input, shape index: {}]
  %s1 = inlined_call_operand.hbm [shape: f32[2,2,128], index: 1, kind: input, shape index: {}]
  %s2 = inlined_call_operand.vmem [shape: f32[1,2,128], index: 2, kind: input, shape index: {}]
  %s3 = inlined_call_operand.hbm [shape: f32[2,2,128], index: 3, kind: output, shape index: {}]
  %s4 = sld [smem:[#allocation0]]
  $region22: #{tpu_custom_call.1} parent=0
    _
  %s6 = ssub.s32 1, %s4
  %s7 = scalar_select 0, %s6, %s4
  %8 = sst [smem:[#allocation3]] %s0
  $region1: #{tpu_custom_call.1} parent=0
    #allocation4 [shape = 'u8[2048]{0}', space=vmem, size = 0x800, scoped, tag = 'input window, operand 1, single buffered']
    #allocation5 [shape = 's32[1]{0}', space=sflag, size = 0x4, scoped, tag = 'scoped memory for tpu_custom_call.1']
    #allocation6 [shape = 's32[1]{0}', space=sflag, size = 0x4, scoped, tag = 'scoped memory for tpu_custom_call.1']
    #allocation7 [shape = 'u8[2048]{0}', space=vmem, size = 0x800, scoped, tag = 'output window, operand 0, single buffered']
    %9 = vsyncpa [#allocation5], 0
    %10 = vsyncpa [#allocation6], 0
    // Predicated region
    $region2: #{tpu_custom_call.1} parent=1 // pred_check
      _
    $region3: #{tpu_custom_call.1} parent=1 // pred_check_branch
      %12 = sbr.rel (0) target = $region5
    $region4: #{tpu_custom_call.1} parent=1 // pred_region
      %14 = vsyncadd [#allocation5], 0
      %s15 = sshll.u32 %s1, 4
      %s16 = int_to_ptr.hbm [resolvable:$true] %s15
      %s17 = sshll.u32 [#allocation4], 4
      %s18 = int_to_ptr.vmem [resolvable:$true] %s17
      %23 = dma.hbm_to_vmem [thread:$0]  %s16, 64, %s18, [#allocation5], 32, 32, 2
    $region5: #{tpu_custom_call.1} parent=1 // pred_fallthru
      _
    // Predicated region
    $region6: #{tpu_custom_call.1} parent=1 // pred_check
      _
    $region7: #{tpu_custom_call.1} parent=1 // pred_check_branch
      %25 = sbr.rel (0) target = $region9
    $region8: #{tpu_custom_call.1} parent=1 // pred_region
      _
    $region9: #{tpu_custom_call.1} parent=1 // pred_fallthru
      _
    // Predicated region
    $region10: #{tpu_custom_call.1} parent=1 // pred_check
      _
    $region11: #{tpu_custom_call.1} parent=1 // pred_check_branch
      %27 = sbr.rel (0) target = $region13
    $region12: #{tpu_custom_call.1} parent=1 // pred_region
      %29 = dma.done [#allocation5], 64
    $region13: #{tpu_custom_call.1} parent=1 // pred_fallthru
      _
    %s30 = smul.u32 0, 2
    %s31 = scalar_lea.vmem %s2, %s30
    %v32 = vld [vmem:[%s31] sm:$0x3]
    %v33 = vld [vmem:[#allocation4] sm:$0x3]
    %v34 = vld [vmem:[#allocation4 + $0x2] sm:$0x3]
    %v35 = vadd.f32 %v33, %v32
    %v36 = vadd.f32 %v34, %v32
    %37 = vst [vmem:[#allocation7] sm:$0x3] %v35
    %38 = vst [vmem:[#allocation7 + $0x2] sm:$0x3] %v36
    // Predicated region
    $region14: #{tpu_custom_call.1} parent=1 // pred_check
      _
    $region15: #{tpu_custom_call.1} parent=1 // pred_check_branch
      %40 = sbr.rel (0) target = $region17
    $region16: #{tpu_custom_call.1} parent=1 // pred_region
      %42 = vsyncadd [#allocation6], 0
      %s43 = sshll.u32 [#allocation7], 4
      %s44 = int_to_ptr.vmem [resolvable:$true] %s43
      %s45 = sshll.u32 %s3, 4
      %s46 = int_to_ptr.hbm [resolvable:$true] %s45
      %51 = dma.vmem_to_hbm [thread:$0]  %s44, 64, %s46, [#allocation6], 32, 32, 2
    $region17: #{tpu_custom_call.1} parent=1 // pred_fallthru
      _
    // Predicated region
    $region18: #{tpu_custom_call.1} parent=1 // pred_check
      _
    $region19: #{tpu_custom_call.1} parent=1 // pred_check_branch
      %53 = sbr.rel (0) target = $region21
    $region20: #{tpu_custom_call.1} parent=1 // pred_region
      %55 = dma.done [#allocation6], 64
    $region21: #{tpu_custom_call.1} parent=1 // pred_fallthru
      _
    %56 = vsyncpa [#allocation5], 1
    %57 = vsyncpa [#allocation6], 1

</llo_original>
